<compile_context>
chip_gen: v6e
topology: v6e:2x2x1
jax: 0.10.0
libtpu: 0.0.40
codegen_flags: <defaults>
</compile_context>

<pallas_src>
from functools import partial

import jax
import jax.numpy as jnp
from jax.experimental import pallas as pl
from jax.experimental.pallas import tpu as pltpu


def _patch_proj_kernel(p_ref, w_ref, b_ref, o_ref):
    # One M-tile per grid step; K and N_pad are kept whole (small for ViT).
    acc = jnp.dot(p_ref[...], w_ref[...], preferred_element_type=jnp.float32)
    # Bias add folded into the final cast/store (single VPU op, hidden under MXU).
    o_ref[...] = (acc + b_ref[...]).astype(o_ref.dtype)


def _round_up(v, m):
    return (v + m - 1) // m * m


def _pick_tm(M, target=512):
    """Pick the M-tile.

    Target ~512 rows (amortizes the ~0.35us per-grid-step overhead; measured
    85%+ of HBM roofline vs ~63% at 256 on v6e), keep at least 2 tiles when M
    allows and keep the tile count EVEN so v7x's two TensorCores get balanced
    'parallel' work, and round to the 8-sublane granule.
    """
    if M <= 16:
        return _round_up(max(M, 8), 8)
    n_tiles = max(2, pl.cdiv(M, target))
    if n_tiles % 2:
        n_tiles += 1
    return min(target, _round_up(pl.cdiv(M, n_tiles), 8))


def _unfold(x, Ph, Pw, flatten_channels_last):
    """(B,C,H,W) -> (B*num_patches, patch_dim) matching the PyTorch unfold."""
    B, C, H, W = x.shape
    nh, nw = H // Ph, W // Pw
    x6 = x.reshape(B, C, nh, Ph, nw, Pw)
    if flatten_channels_last:
        p = x6.transpose(0, 2, 4, 3, 5, 1)   # B, nh, nw, Ph, Pw, C
    else:
        p = x6.transpose(0, 2, 4, 1, 3, 5)   # B, nh, nw, C, Ph, Pw
    return p.reshape(B * nh * nw, C * Ph * Pw)


@partial(jax.jit, static_argnames=("patch_size", "flatten_channels_last",
                                   "compute_dtype", "out_dtype"))
def patch_embed_pallas(x, weight, bias, patch_size,
                       flatten_channels_last=False,
                       compute_dtype=jnp.bfloat16, out_dtype=None):
    """x: (B, C, H, W); weight: (embed_dim, patch_dim); bias: (embed_dim,)."""
    B, C, H, W = x.shape
    Ph, Pw = patch_size
    assert H % Ph == 0 and W % Pw == 0
    nh, nw = H // Ph, W // Pw
    num_patches = nh * nw
    K = C * Ph * Pw                      # patch_dim
    N = weight.shape[0]                  # embed_dim
    assert weight.shape == (N, K)
    M = B * num_patches

    cdt = jnp.dtype(compute_dtype) if compute_dtype is not None else jnp.dtype(x.dtype)
    odt = jnp.dtype(out_dtype) if out_dtype is not None else jnp.dtype(x.dtype)

    # Unfold stays as pure reshape/transpose/cast glue in the same jit: with
    # allow_input_fusion XLA may fuse it into the pallas_call input DMA; if it
    # declines, a single clean materialized copy is produced instead.
    patches = _unfold(x, Ph, Pw, flatten_channels_last).astype(cdt)   # (M, K)
    w_t = weight.T.astype(cdt)                                        # (K, N)

    # Lane-dense output: pad embed dim to a multiple of 128 (zeros, sliced off
    # below).  No-op for standard ViT dims (768 / 1024 / 1280).
    N_pad = _round_up(N, 128)
    if N_pad != N:
        w_t = jnp.pad(w_t, ((0, 0), (0, N_pad - N)))
        b2d = jnp.pad(bias, (0, N_pad - N)).reshape(1, N_pad).astype(jnp.float32)
    else:
        b2d = bias.reshape(1, N_pad).astype(jnp.float32)

    # M tiling: ragged last tile handled by Pallas partial-block masking, so
    # the patches operand is never padded in HBM.
    tm = _pick_tm(M)

    csz = cdt.itemsize
    osz = odt.itemsize

    def vmem_est(tm_):
        return (2 * tm_ * K * csz          # patches tile, double-buffered
                + 2 * tm_ * N_pad * osz    # output tile, double-buffered
                + 2 * K * N_pad * csz      # weight (grid-invariant; re-DMA elided)
                + 2 * N_pad * 4)           # bias

    # Prefer shrinking tm over raising the scoped-VMEM limit (v7x has only
    # 64 MiB physical VMEM; leave room for internal scratch + fused producer).
    VMEM_BUDGET = 20 << 20
    while vmem_est(tm) > VMEM_BUDGET and tm > 8:
        tm = max(8, _round_up(tm // 2, 8))

    grid_m = pl.cdiv(M, tm)

    # Always set the limit explicitly: v5e's scoped default is 16 MiB
    # (v6e/v7x: 32 MiB).  Floor at 16 MiB, cap well under v7x physical.
    vmem_limit = int(min(max(vmem_est(tm) + (8 << 20), 16 << 20), 40 << 20))

    out = pl.pallas_call(
        _patch_proj_kernel,
        out_shape=jax.ShapeDtypeStruct((M, N_pad), odt),
        grid_spec=pltpu.PrefetchScalarGridSpec(
            num_scalar_prefetch=0,
            grid=(grid_m,),
            in_specs=[
                pl.BlockSpec((tm, K), lambda i: (i, 0)),
                # Grid-invariant weight / bias: constant index_map -> the
                # pipeline elides re-fetches after the first DMA.
                pl.BlockSpec((K, N_pad), lambda i: (0, 0)),
                pl.BlockSpec((1, N_pad), lambda i: (0, 0)),
            ],
            out_specs=pl.BlockSpec((tm, N_pad), lambda i: (i, 0)),
        ),
        compiler_params=pltpu.CompilerParams(
            dimension_semantics=("parallel",),
            # Let XLA fuse the unfold/astype (patches), the transpose (weight)
            # and the pad/reshape (bias) into the operand DMAs if profitable.
            allow_input_fusion=[True, True, True],
            vmem_limit_bytes=vmem_limit,
        ),
    )(patches, w_t, b2d)

    if N_pad != N:
        out = out[:, :N]
    return out.reshape(B, num_patches, N)


def patch_embed_ref(x, weight, bias, patch_size, flatten_channels_last=False):
    """Pure-JAX reference matching the PyTorch forward exactly (f32, HIGHEST)."""
    B, C, H, W = x.shape
    Ph, Pw = patch_size
    nh, nw = H // Ph, W // Pw
    x6 = x.reshape(B, C, nh, Ph, nw, Pw)
    if flatten_channels_last:
        p = x6.transpose(0, 2, 4, 3, 5, 1).reshape(B, nh * nw, Ph * Pw * C)
    else:
        p = x6.transpose(0, 2, 4, 1, 3, 5).reshape(B, nh * nw, C * Ph * Pw)
    return jnp.matmul(p, weight.T, precision=jax.lax.Precision.HIGHEST) + bias


if __name__ == "__main__":
    # Small, module-consistent shapes: img 16x16, patch 4x4, 4 channels, dim 32.
    B, C, H, W = 2, 4, 16, 16
    Ph, Pw = 4, 4
    embed_dim = 32
    patch_dim = C * Ph * Pw  # 64

    key = jax.random.PRNGKey(0)
    kx, kw, kb = jax.random.split(key, 3)
    x = jax.random.normal(kx, (B, C, H, W), dtype=jnp.float32)
    bound = 1.0 / (patch_dim ** 0.5)
    weight = jax.random.uniform(kw, (embed_dim, patch_dim), jnp.float32, -bound, bound)
    bias = jax.random.uniform(kb, (embed_dim,), jnp.float32, -bound, bound)

    ref = patch_embed_ref(x, weight, bias, (Ph, Pw))
    ref_cl = patch_embed_ref(x, weight, bias, (Ph, Pw), flatten_channels_last=True)

    # f32 compute path (module-faithful numerics; tolerance covers MXU f32
    # pass decomposition differences vs the HIGHEST-precision reference).
    out_f32 = jax.block_until_ready(
        patch_embed_pallas(x, weight, bias, patch_size=(Ph, Pw),
                           compute_dtype=jnp.float32))
    assert out_f32.shape == (B, (H // Ph) * (W // Pw), embed_dim)
    assert jnp.allclose(out_f32, ref, atol=2e-2, rtol=2e-2), "mismatch (f32 path)"

    # Default path: bf16 operands, f32 accumulation (per perf review).
    out_bf = jax.block_until_ready(
        patch_embed_pallas(x, weight, bias, patch_size=(Ph, Pw)))
    assert out_bf.shape == (B, (H // Ph) * (W // Pw), embed_dim)
    assert jnp.allclose(out_bf, ref, atol=3e-2, rtol=3e-2), "mismatch (bf16 path)"

    # flatten_channels_last=True path.
    out_cl = jax.block_until_ready(
        patch_embed_pallas(x, weight, bias, patch_size=(Ph, Pw),
                           flatten_channels_last=True, compute_dtype=jnp.float32))
    assert jnp.allclose(out_cl, ref_cl, atol=2e-2, rtol=2e-2), "mismatch (channels-last)"

    print("KERNEL_OK")
</pallas_src>

<mosaic_0001>
module attributes {stable_mosaic.version = 11 : i64} {
  func.func @_patch_proj_kernel(%arg0: i32, %arg1: memref<16x64xf32, #tpu.memory_space<vmem>>, %arg2: memref<64x128xf32, #tpu.memory_space<vmem>>, %arg3: memref<1x128xf32, #tpu.memory_space<vmem>>, %arg4: memref<16x128xf32, #tpu.memory_space<vmem>>) attributes {dimension_semantics = [#tpu.dimension_semantics<parallel>], iteration_bounds = array<i64: 2>, scalar_prefetch = 0 : i64, scratch_operands = 0 : i64, tpu.core_type = #tpu.core_type<tc>, window_params = [{transform_indices = @transform_0, window_bounds = array<i64: 16, 64>}, {pipeline_mode = #tpu.pipeline_mode<synchronous>, transform_indices = @transform_1, window_bounds = array<i64: 64, 128>}, {pipeline_mode = #tpu.pipeline_mode<synchronous>, transform_indices = @transform_2, window_bounds = array<i64: 1, 128>}, {transform_indices = @transform_3, window_bounds = array<i64: 16, 128>}]} {
    %c0 = arith.constant 0 : index
    %c0_0 = arith.constant 0 : index
    %0 = vector.load %arg1[%c0, %c0_0] : memref<16x64xf32, #tpu.memory_space<vmem>>, vector<16x64xf32>
    %c0_1 = arith.constant 0 : index
    %c0_2 = arith.constant 0 : index
    %1 = vector.load %arg2[%c0_1, %c0_2] : memref<64x128xf32, #tpu.memory_space<vmem>>, vector<64x128xf32>
    %cst = arith.constant dense<0.000000e+00> : vector<16x128xf32>
    %2 = tpu.matmul %0, %1, %cst {dimension_numbers = #tpu.dot_dimension_numbers<[1], [0], [0], [1], [0, 0, 1, 1], [], []>} : vector<16x64xf32>, vector<64x128xf32>, vector<16x128xf32> -> vector<16x128xf32>
    %c0_3 = arith.constant 0 : index
    %c0_4 = arith.constant 0 : index
    %3 = vector.load %arg3[%c0_3, %c0_4] : memref<1x128xf32, #tpu.memory_space<vmem>>, vector<1x128xf32>
    %4 = vector.broadcast %3 : vector<1x128xf32> to vector<16x128xf32>
    %5 = arith.addf %2, %4 : vector<16x128xf32>
    %c0_5 = arith.constant 0 : index
    %c0_6 = arith.constant 0 : index
    %6 = vector.load %arg4[%c0_5, %c0_6] : memref<16x128xf32, #tpu.memory_space<vmem>>, vector<16x128xf32>
    tpu.vector_store %arg4[%c0_5, %c0_6], %5 {strides = array<i32>} : memref<16x128xf32, #tpu.memory_space<vmem>>, vector<16x128xf32>,
    return
  }
  func.func @transform_0(%arg0: i32) -> (i32, i32) {
    %c0_i32 = arith.constant 0 : i32
    %c0_i32_0 = arith.constant 0 : i32
    return %arg0, %c0_i32 : i32, i32
  }
  func.func @transform_1(%arg0: i32) -> (i32, i32) {
    %c0_i32 = arith.constant 0 : i32
    %c0_i32_0 = arith.constant 0 : i32
    %c0_i32_1 = arith.constant 0 : i32
    return %c0_i32, %c0_i32_0 : i32, i32
  }
  func.func @transform_2(%arg0: i32) -> (i32, i32) {
    %c0_i32 = arith.constant 0 : i32
    %c0_i32_0 = arith.constant 0 : i32
    %c0_i32_1 = arith.constant 0 : i32
    return %c0_i32, %c0_i32_0 : i32, i32
  }
  func.func @transform_3(%arg0: i32) -> (i32, i32) {
    %c0_i32 = arith.constant 0 : i32
    %c0_i32_0 = arith.constant 0 : i32
    return %arg0, %c0_i32 : i32, i32
  }
}

</mosaic_0001>

<llo_original>
// kernel: patch_embed_pallas.2
$region0: #{patch_embed_pallas.2}
  #allocation0 [shape = 'u32[]', space=smem, size = 0x4, offset = 0x4, fixed_abs, tag = 'smem constant byte address 0x4 - core index']
  #allocation1 [shape = 'u32[144,128]{1,0:T(1,128)}', space=vmem, size = 0x12000, scoped, tag = 'internal scratch']
  #allocation2 [shape = 'u32[2048]{0}', space=vmem, size = 0x2000, scoped, tag = 'scoped memory for patch_embed_pallas.2']
  #allocation3 [shape = 'u32[2048]{0}', space=vmem, size = 0x2000, scoped, tag = 'scoped memory for patch_embed_pallas.2']
  #allocation4 [shape = 'u32[2048]{0}', space=vmem, size = 0x2000, scoped, tag = 'scoped memory for patch_embed_pallas.2']
  #allocation5 [shape = 'u32[2048]{0}', space=vmem, size = 0x2000, scoped, tag = 'scoped memory for patch_embed_pallas.2']
  #allocation6 [shape = 'u32[2048]{0}', space=vmem, size = 0x2000, scoped, tag = 'scoped memory for patch_embed_pallas.2']
  #allocation7 [shape = 'u32[2048]{0}', space=vmem, size = 0x2000, scoped, tag = 'scoped memory for patch_embed_pallas.2']
  #allocation8 [shape = 'u32[2048]{0}', space=vmem, size = 0x2000, scoped, tag = 'scoped memory for patch_embed_pallas.2']
  #allocation9 [shape = 'u32[2048]{0}', space=vmem, size = 0x2000, scoped, tag = 'scoped memory for patch_embed_pallas.2']
  #allocation10 [shape = 'u32[2048]{0}', space=vmem, size = 0x2000, scoped, tag = 'scoped memory for patch_embed_pallas.2']
  #allocation11 [shape = 'u32[2048]{0}', space=vmem, size = 0x2000, scoped, tag = 'scoped memory for patch_embed_pallas.2']
  %s0 = inlined_call_operand.vmem [shape: f32[32,64], index: 0, kind: input, shape index: {}]
  %s1 = inlined_call_operand.vmem [shape: f32[64,32], index: 1, kind: input, shape index: {}]
  %s2 = inlined_call_operand.<no memory space> [shape: f32[], index: 2, kind: input, shape index: {}]
  %s3 = inlined_call_operand.vmem [shape: f32[32], index: 3, kind: input, shape index: {}]
  %s4 = inlined_call_operand.hbm [shape: f32[32,128], index: 4, kind: output, shape index: {}]
  %s5 = sld [smem:[#allocation0]]
  $region45: #{patch_embed_pallas.2} parent=0
    _
  %s7 = ssub.s32 1, %s5
  %s8 = scalar_select 0, %s7, %s5
  %v9 = vstv %s2
  %v10 = vstv %s2
  $region1: #{patch_embed_pallas.2} parent=0
    #allocation12 [shape = 'u8[16384]{0}', space=vmem, size = 0x4000, scoped, tag = 'output window, operand 0']
    #allocation13 [shape = 's32[2]{0}', space=sflag, size = 0x8, scoped, tag = 'scoped memory for patch_embed_pallas.2']
    %11 = vsyncpa [#allocation13], 0
    %s12 = scalar_lea.sflag [#allocation13], 1
    %13 = vsyncpa %s12, 0
    loop: start=0, step=1, limit=4
    $region2: #{patch_embed_pallas.2} parent=1 // loop_pre_header
      _
    $region3: #{patch_embed_pallas.2} parent=1 // loop_header
      %s15 = sphi 0, %s19
      %p16 = scmp.ge.s32.totalorder %s15, 4
      %s25 = sphi 0, %s27
      %s28 = sphi 0, %s25
      %s29 = sphi 0, %s28
      %s45 = sphi 0, %s29
      %s49 = sphi 0, %s49
      %s51 = sphi 0, %s49
      %s52 = sphi 0, %s51
      %s66 = sphi 0, %s52
      %s70 = sphi 0, %s70
      %s72 = sphi 0, %s70
      %s73 = sphi 0, %s72
      %s87 = sphi 0, %s73
      %s93 = sphi 0, %s95
      %s96 = sphi 0, %s93
      %s97 = sphi 0, %s96
      %s113 = sphi 0, %s97
    $region4: #{patch_embed_pallas.2} parent=1 // loop_header_branch
      %18 = sbr.rel (%p16) target = $region8
    $region5: #{patch_embed_pallas.2} parent=1 // loop_body
      %s20 = ssub.s32 %s15, 1
      %s21 = ssub.s32 %s15, 2
      %s22 = sadd.s32 %s15, 1
      %s23 = ssub.s32 %s15, %s22
      %p24 = scmp.eq.s32.totalorder %s23, 0
      %s26 = sadd.s32 %s25, 1
      %s27 = scalar_select %p24, %s25, %s26
      %p30 = pneg %p24
      %p31 = scmp.eq.s32.totalorder %s15, 1
      %p32 = por %p30, %p31
      %p33 = scmp.ne.s32.totalorder %s25, %s28
      %p34 = scmp.eq.s32.totalorder %s15, 0
      %p35 = por %p33, %p34
      %p36 = scmp.ne.s32.totalorder %s25, %s28
      %p37 = scmp.eq.s32.totalorder %s20, 1
      %p38 = por %p36, %p37
      %p39 = scmp.ne.s32.totalorder %s28, %s29
      %p40 = scmp.eq.s32.totalorder %s20, 0
      %p41 = por %p39, %p40
      %p42 = scmp.ne.s32.totalorder %s28, %s29
      %p43 = scmp.eq.s32.totalorder %s21, 1
      %p44 = por %p42, %p43
      %p46 = scmp.ne.s32.totalorder %s29, %s45
      %p47 = scmp.eq.s32.totalorder %s21, 0
      %p48 = por %p46, %p47
      %s50 = sadd.s32 %s49, 1
      %p53 = scmp.eq.s32.totalorder %s15, 1
      %p54 = scmp.ne.s32.totalorder %s49, %s51
      %p55 = scmp.eq.s32.totalorder %s15, 0
      %p56 = por %p54, %p55
      %p57 = scmp.ne.s32.totalorder %s49, %s51
      %p58 = scmp.eq.s32.totalorder %s20, 1
      %p59 = por %p57, %p58
      %p60 = scmp.ne.s32.totalorder %s51, %s52
      %p61 = scmp.eq.s32.totalorder %s20, 0
      %p62 = por %p60, %p61
      %p63 = scmp.ne.s32.totalorder %s51, %s52
      %p64 = scmp.eq.s32.totalorder %s21, 1
      %p65 = por %p63, %p64
      %p67 = scmp.ne.s32.totalorder %s52, %s66
      %p68 = scmp.eq.s32.totalorder %s21, 0
      %p69 = por %p67, %p68
      %s71 = sadd.s32 %s70, 1
      %p74 = scmp.eq.s32.totalorder %s15, 1
      %p75 = scmp.ne.s32.totalorder %s70, %s72
      %p76 = scmp.eq.s32.totalorder %s15, 0
      %p77 = por %p75, %p76
      %p78 = scmp.ne.s32.totalorder %s70, %s72
      %p79 = scmp.eq.s32.totalorder %s20, 1
      %p80 = por %p78, %p79
      %p81 = scmp.ne.s32.totalorder %s72, %s73
      %p82 = scmp.eq.s32.totalorder %s20, 0
      %p83 = por %p81, %p82
      %p84 = scmp.ne.s32.totalorder %s72, %s73
      %p85 = scmp.eq.s32.totalorder %s21, 1
      %p86 = por %p84, %p85
      %p88 = scmp.ne.s32.totalorder %s73, %s87
      %p89 = scmp.eq.s32.totalorder %s21, 0
      %p90 = por %p88, %p89
      %s91 = ssub.s32 %s15, %s22
      %p92 = scmp.eq.s32.totalorder %s91, 0
      %s94 = sadd.s32 %s93, 1
      %s95 = scalar_select %p92, %s93, %s94
      %p98 = pneg %p92
      %p99 = scmp.eq.s32.totalorder %s15, 1
      %p100 = por %p98, %p99
      %p101 = scmp.ne.s32.totalorder %s93, %s96
      %p102 = scmp.eq.s32.totalorder %s15, 0
      %p103 = por %p101, %p102
      %p104 = scmp.ne.s32.totalorder %s93, %s96
      %p105 = scmp.eq.s32.totalorder %s20, 1
      %p106 = por %p104, %p105
      %p107 = scmp.ne.s32.totalorder %s96, %s97
      %p108 = scmp.eq.s32.totalorder %s20, 0
      %p109 = por %p107, %p108
      %p110 = scmp.ne.s32.totalorder %s96, %s97
      %p111 = scmp.eq.s32.totalorder %s21, 1
      %p112 = por %p110, %p111
      %p114 = scmp.ne.s32.totalorder %s97, %s113
      %p115 = scmp.eq.s32.totalorder %s21, 0
      %p116 = por %p114, %p115
      %p117 = scmp.le.s32.totalorder 1, %s15
      %p118 = scmp.lt.s32.totalorder %s15, 3
      %p119 = pnand %p117, %p118
      %p120 = pneg %p119
      // Predicated region
      $region9: #{patch_embed_pallas.2} parent=5 // pred_check
        _
      $region10: #{patch_embed_pallas.2} parent=5 // pred_check_branch
        %122 = sbr.rel (%p119) target = $region12
      $region11: #{patch_embed_pallas.2} parent=5 // pred_region
        %s123 = ssub.s32 %s15, 1
        // Predicated region
        $region13: #{patch_embed_pallas.2} parent=11 // pred_check
          %p124 = pneg %p62
        $region14: #{patch_embed_pallas.2} parent=11 // pred_check_branch
          %126 = sbr.rel (%p124) target = $region16
        $region15: #{patch_embed_pallas.2} parent=11 // pred_region
          _
        $region16: #{patch_embed_pallas.2} parent=11 // pred_fallthru
          _
        // Predicated region
        $region17: #{patch_embed_pallas.2} parent=11 // pred_check
          %p127 = pneg %p83
        $region18: #{patch_embed_pallas.2} parent=11 // pred_check_branch
          %129 = sbr.rel (%p127) target = $region20
        $region19: #{patch_embed_pallas.2} parent=11 // pred_region
          _
        $region20: #{patch_embed_pallas.2} parent=11 // pred_fallthru
          _
      $region12: #{patch_embed_pallas.2} parent=5 // pred_fallthru
        _
      %p130 = scmp.lt.s32.totalorder %s15, 2
      // Predicated region
      $region21: #{patch_embed_pallas.2} parent=5 // pred_check
        %p131 = pneg %p130
      $region22: #{patch_embed_pallas.2} parent=5 // pred_check_branch
        %133 = sbr.rel (%p131) target = $region24
      $region23: #{patch_embed_pallas.2} parent=5 // pred_region
        // Predicated region
        $region25: #{patch_embed_pallas.2} parent=23 // pred_check
          %p134 = pneg %p35
        $region26: #{patch_embed_pallas.2} parent=23 // pred_check_branch
          %136 = sbr.rel (%p134) target = $region28
        $region27: #{patch_embed_pallas.2} parent=23 // pred_region
          %s137 = smul.u32 2, %s15
          %p138 = scmp.lt.s32.totalorder %s137, 3
          %s139 = scalar_select %p138, %s137, 3
          %s140 = smul.addr %s139, 8
          %s141 = scalar_lea.vmem %s0, %s140
          %s142 = smul.u32 2, %s15
        $region28: #{patch_embed_pallas.2} parent=23 // pred_fallthru
          _
      $region24: #{patch_embed_pallas.2} parent=5 // pred_fallthru
        _
      %p143 = scmp.le.s32.totalorder 1, %s15
      %p144 = scmp.lt.s32.totalorder %s15, 3
      %p145 = pnand %p143, %p144
      %p146 = pneg %p145
      // Predicated region
      $region29: #{patch_embed_pallas.2} parent=5 // pred_check
        _
      $region30: #{patch_embed_pallas.2} parent=5 // pred_check_branch
        %148 = sbr.rel (%p145) target = $region32
      $region31: #{patch_embed_pallas.2} parent=5 // pred_region
        #allocation14 [shape = 'u8[32768]{0}', space=vmem, size = 0x8000, dematerialized = true, scoped, tag = 'FusionAdapter Buffer %fusion.1 = f32[64,128]{1,0:T(8,128)} fusion(%param_1.3, %param_2.2), kind=kLoop, calls=%fused_computation.2.clone, metadata={op_name="jit(patch_embed_pallas)/jit(_pad)/pad" stack_frame_id=12}']
        #allocation15 [shape = 'u8[512]{0}', space=vmem, size = 0x400, dematerialized = true, scoped, tag = 'FusionAdapter Buffer %fusion.2 = f32[1,128]{1,0:T(1,128)} fusion(%param_3.2, %param_2.2), kind=kLoop, calls=%fused_computation.3.clone, metadata={op_name="jit(patch_embed_pallas)/reshape" stack_frame_id=14}']
        %s149 = ssub.s32 %s15, 1
        %s150 = smul.u32 2, %s20
        %p151 = scmp.lt.s32.totalorder %s150, 3
        %s152 = scalar_select %p151, %s150, 3
        %s153 = smul.addr %s152, 8
        %s154 = scalar_lea.vmem %s0, %s153
        %p155 = pneg %p41
        %p156 = pneg %p38
        %p157 = pneg %p62
        %p158 = pneg %p59
        %p159 = pneg %p83
        %p160 = pneg %p80
        %p161 = pneg %p109
        %p162 = pneg %p106
        %s163 = sand.u32 %s96, 1
        %s164 = scalar_lea.sflag [#allocation13], %s163
        %s165 = sand.u32 %s96, 1
        %s166 = smul.addr %s165, 16
        %s167 = scalar_lea.vmem [#allocation12], %s166
        %s168 = smul.u32 2, %s20
        %p169 = scmp.lt.s32.totalorder %s168, 3
        %s170 = scalar_select %p169, %s168, 3
        %s171 = smul.addr %s170, 8
        %s172 = scalar_lea.vmem %s0, %s171
        %s173 = smul.u32 2, %s20
        %s174 = smul.u32 2, %s20
        %v175 = vld [vmem:[%s1] sm:$0xff]
        %v176 = vlaneseq
        %v177 = vand.u32 %v176, 127
        %vm179 = vcmp.lt.s32.totalorder %v177, 32
        %v180 = vsel %vm179, %v175, %v9
        %s182 = ssub.s32 256, 1
        %183 = vst [vmem:[#allocation14] sm:%s182] %v180
        %s184 = scalar_lea.vmem %s1, 8
        %v185 = vld [vmem:[%s184] sm:$0xff]
        %v186 = vlaneseq
        %v187 = vand.u32 %v186, 127
        %vm189 = vcmp.lt.s32.totalorder %v187, 32
        %v190 = vsel %vm189, %v185, %v9
        %s191 = scalar_lea.vmem [#allocation14], 8
        %s193 = ssub.s32 256, 1
        %194 = vst [vmem:[%s191] sm:%s193] %v190
        %s195 = scalar_lea.vmem %s1, 16
        %v196 = vld [vmem:[%s195] sm:$0xff]
        %v197 = vlaneseq
        %v198 = vand.u32 %v197, 127
        %vm200 = vcmp.lt.s32.totalorder %v198, 32
        %v201 = vsel %vm200, %v196, %v9
        %s202 = scalar_lea.vmem [#allocation14], 16
        %s204 = ssub.s32 256, 1
        %205 = vst [vmem:[%s202] sm:%s204] %v201
        %s206 = scalar_lea.vmem %s1, 24
        %v207 = vld [vmem:[%s206] sm:$0xff]
        %v208 = vlaneseq
        %v209 = vand.u32 %v208, 127
        %vm211 = vcmp.lt.s32.totalorder %v209, 32
        %v212 = vsel %vm211, %v207, %v9
        %s213 = scalar_lea.vmem [#allocation14], 24
        %s215 = ssub.s32 256, 1
        %216 = vst [vmem:[%s213] sm:%s215] %v212
        %s217 = scalar_lea.vmem %s1, 32
        %v218 = vld [vmem:[%s217] sm:$0xff]
        %v219 = vlaneseq
        %v220 = vand.u32 %v219, 127
        %vm222 = vcmp.lt.s32.totalorder %v220, 32
        %v223 = vsel %vm222, %v218, %v9
        %s224 = scalar_lea.vmem [#allocation14], 32
        %s226 = ssub.s32 256, 1
        %227 = vst [vmem:[%s224] sm:%s226] %v223
        %s228 = scalar_lea.vmem %s1, 40
        %v229 = vld [vmem:[%s228] sm:$0xff]
        %v230 = vlaneseq
        %v231 = vand.u32 %v230, 127
        %vm233 = vcmp.lt.s32.totalorder %v231, 32
        %v234 = vsel %vm233, %v229, %v9
        %s235 = scalar_lea.vmem [#allocation14], 40
        %s237 = ssub.s32 256, 1
        %238 = vst [vmem:[%s235] sm:%s237] %v234
        %s239 = scalar_lea.vmem %s1, 48
        %v240 = vld [vmem:[%s239] sm:$0xff]
        %v241 = vlaneseq
        %v242 = vand.u32 %v241, 127
        %vm244 = vcmp.lt.s32.totalorder %v242, 32
        %v245 = vsel %vm244, %v240, %v9
        %s246 = scalar_lea.vmem [#allocation14], 48
        %s248 = ssub.s32 256, 1
        %249 = vst [vmem:[%s246] sm:%s248] %v245
        %s250 = scalar_lea.vmem %s1, 56
        %v251 = vld [vmem:[%s250] sm:$0xff]
        %v252 = vlaneseq
        %v253 = vand.u32 %v252, 127
        %vm255 = vcmp.lt.s32.totalorder %v253, 32
        %v256 = vsel %vm255, %v251, %v9
        %s257 = scalar_lea.vmem [#allocation14], 56
        %s259 = ssub.s32 256, 1
        %260 = vst [vmem:[%s257] sm:%s259] %v256
        %v261 = vld [vmem:[%s3] sm:$0x1]
        %v262 = vlaneseq
        %vm264 = vcmp.lt.s32.totalorder %v262, 32
        %v265 = vsel %vm264, %v261, %v10
        %s267 = ssub.s32 2, 1
        %268 = vst [vmem:[#allocation15] sm:%s267] %v265
        %v269 = vld [vmem:[%s172] sm:$0xff]
        %v270 = vld [vmem:[%s172 + $0x8] sm:$0xff]
        %v271 = vld [vmem:[#allocation14] sm:$0xff]
        %v272 = vld [vmem:[#allocation14 + $0x8] sm:$0xff]
        %v273 = vld [vmem:[#allocation14 + $0x10] sm:$0xff]
        %v274 = vld [vmem:[#allocation14 + $0x18] sm:$0xff]
        %v275 = vld [vmem:[#allocation14 + $0x20] sm:$0xff]
        %v276 = vld [vmem:[#allocation14 + $0x28] sm:$0xff]
        %v277 = vld [vmem:[#allocation14 + $0x30] sm:$0xff]
        %v278 = vld [vmem:[#allocation14 + $0x38] sm:$0xff]
        %v279 = vld [vmem:[#allocation15] sm:$0x1]
        %v281 = vlaneseq
        %v282 = vshrl.u32 %v281, 7
        %v283 = vsub.s32 0, %v282
        %v284 = vrot.slane %v279, %v283
        %vm286 = vcmask 523264
        %v288 = vsel %vm286, %v269, 0
        %v291 = vsel %vm286, %v270, 0
        %293 = vmatprep.subr.mxu0 0.0
        %294 = vmatpush1.msra.mxu0 0.0
        %295 = vmatprep.subr.mxu0 0.0
        %296 = vmatpush1.msra.mxu0 0.0
        %297 = vmatprep.subr.mxu0 0.0
        %298 = vmatpush1.msra.mxu0 0.0
        %299 = vmatprep.subr.mxu0 0.0
        %300 = vmatpush1.msra.mxu0 0.0
        %301 = vmatprep.subr.mxu0 0.0
        %302 = vmatpush1.msra.mxu0 0.0
        %303 = vmatprep.subr.mxu0 0.0
        %304 = vmatpush1.msra.mxu0 0.0
        %305 = vmatprep.subr.mxu0 0.0
        %306 = vmatpush1.msra.mxu0 0.0
        %307 = vmatprep.subr.mxu0 0.0
        %308 = vmatpush1.msra.mxu0 0.0
        %309 = vmatprep.subr.mxu0 0.0
        %310 = vmatpush1.msra.mxu0 %v278
        %311 = vmatprep.subr.mxu0 0.0
        %312 = vmatpush1.msra.mxu0 %v277
        %313 = vmatprep.subr.mxu0 0.0
        %314 = vmatpush1.msra.mxu0 %v276
        %315 = vmatprep.subr.mxu0 0.0
        %316 = vmatpush1.msra.mxu0 %v275
        %317 = vmatprep.subr.mxu0 0.0
        %318 = vmatpush1.msra.mxu0 %v274
        %319 = vmatprep.subr.mxu0 0.0
        %320 = vmatpush1.msra.mxu0 %v273
        %321 = vmatprep.subr.mxu0 0.0
        %322 = vmatpush1.msra.mxu0 %v272
        %323 = vmatprep.subr.mxu0 0.0
        %324 = vmatpush1.msra.mxu0 %v271
        %325 = vmatprep.subr.mxu0 0.0
        %326 = vmatpush2.msra.mxu0 0.0
        %327 = vmatprep.subr.mxu0 0.0
        %328 = vmatpush2.msra.mxu0 0.0
        %329 = vmatprep.subr.mxu0 0.0
        %330 = vmatpush2.msra.mxu0 0.0
        %331 = vmatprep.subr.mxu0 0.0
        %332 = vmatpush2.msra.mxu0 0.0
        %333 = vmatprep.subr.mxu0 0.0
        %334 = vmatpush2.msra.mxu0 0.0
        %335 = vmatprep.subr.mxu0 0.0
        %336 = vmatpush2.msra.mxu0 0.0
        %337 = vmatprep.subr.mxu0 0.0
        %338 = vmatpush2.msra.mxu0 0.0
        %339 = vmatprep.subr.mxu0 0.0
        %340 = vmatpush2.msra.mxu0 0.0
        %341 = vmatprep.subr.mxu0 0.0
        %342 = vmatpush2.msra.mxu0 0.0
        %343 = vmatprep.subr.mxu0 0.0
        %344 = vmatpush2.msra.mxu0 0.0
        %345 = vmatprep.subr.mxu0 0.0
        %346 = vmatpush2.msra.mxu0 0.0
        %347 = vmatprep.subr.mxu0 0.0
        %348 = vmatpush2.msra.mxu0 0.0
        %349 = vmatprep.subr.mxu0 0.0
        %350 = vmatpush2.msra.mxu0 0.0
        %351 = vmatprep.subr.mxu0 0.0
        %352 = vmatpush2.msra.mxu0 0.0
        %353 = vmatprep.subr.mxu0 0.0
        %354 = vmatpush2.msra.mxu0 0.0
        %355 = vmatprep.subr.mxu0 0.0
        %356 = vmatpush2.msra.mxu0 0.0
        %357 = vmatprep.mubr.f32.mxu0 0.0
        %358 = vmatmul.mubr.f32.gmra.mxu0 %v288
        %v359 = vpop.f32.mrf.mxu0
        %v360 = vadd.f32 %v284, %v359
        %v361 = vpop.f32.mrf.mxu0
        %362 = vmatprep.mubr.f32.mxu0 0.0
        %363 = vmatmul.mubr.f32.gmra.mxu0 %v291
        %v364 = vpop.f32.mrf.mxu0
        %v365 = vadd.f32 %v284, %v364
        %v366 = vpop.f32.mrf.mxu0
        %367 = vdwg.mxu0
        %368 = vst [vmem:[%s167] sm:$0xff] %v360
        %369 = vst [vmem:[%s167 + $0x8] sm:$0xff] %v365
        %s370 = sand.u32 %s96, 1
        %s371 = scalar_lea.sflag [#allocation13], %s370
        %s372 = sand.u32 %s96, 1
        %s373 = smul.addr %s372, 16
        %s374 = scalar_lea.vmem [#allocation12], %s373
        // Predicated region
        $region33: #{patch_embed_pallas.2} parent=31 // pred_check
          %p375 = pneg %p106
        $region34: #{patch_embed_pallas.2} parent=31 // pred_check_branch
          %377 = sbr.rel (%p375) target = $region36
        $region35: #{patch_embed_pallas.2} parent=31 // pred_region
          %s378 = smul.u32 2, %s20
          %s380 = ssub.s32 256, 256
          %381 = vsyncadd %s371, %s380
          %s382 = smul.addr %s378, 128
          %s383 = scalar_lea.hbm %s4, %s382
          %s384 = sshll.u32 %s374, 4
          %s385 = int_to_ptr.vmem [resolvable:$true] %s384
          %390 = dma.vmem_to_hbm [thread:$0]  %s385, 256, %s383, %s371, 128, 128, 8
        $region36: #{patch_embed_pallas.2} parent=31 // pred_fallthru
          _
      $region32: #{patch_embed_pallas.2} parent=5 // pred_fallthru
        _
      %p391 = scmp.le.s32.totalorder 2, %s15
      // Predicated region
      $region37: #{patch_embed_pallas.2} parent=5 // pred_check
        %p392 = pneg %p391
      $region38: #{patch_embed_pallas.2} parent=5 // pred_check_branch
        %394 = sbr.rel (%p392) target = $region40
      $region39: #{patch_embed_pallas.2} parent=5 // pred_region
        %s395 = ssub.s32 %s15, 2
        // Predicated region
        $region41: #{patch_embed_pallas.2} parent=39 // pred_check
          %p396 = pneg %p112
        $region42: #{patch_embed_pallas.2} parent=39 // pred_check_branch
          %398 = sbr.rel (%p396) target = $region44
        $region43: #{patch_embed_pallas.2} parent=39 // pred_region
          %s399 = sand.u32 %s97, 1
          %s400 = scalar_lea.sflag [#allocation13], %s399
          %s401 = sand.u32 %s97, 1
          %s402 = smul.addr %s401, 16
          %s403 = scalar_lea.vmem [#allocation12], %s402
          %404 = dma.done %s400, 256
        $region44: #{patch_embed_pallas.2} parent=39 // pred_fallthru
          _
      $region40: #{patch_embed_pallas.2} parent=5 // pred_fallthru
        _
    $region6: #{patch_embed_pallas.2} parent=1 // loop_footer
      %s19 = sadd.s32 1, %s15
    $region7: #{patch_embed_pallas.2} parent=1 // loop_footer_branch
      %14 = sbr.rel target = $region3
    $region8: #{patch_embed_pallas.2} parent=1 // loop_exit
      _
    %405 = vsyncpa [#allocation13], 1
    %s406 = scalar_lea.sflag [#allocation13], 1
    %407 = vsyncpa %s406, 1

</llo_original>
